<compile_context>
chip_gen: v7x
topology: tpu7x:2x2x1
jax: 0.10.0
libtpu: 0.0.40
codegen_flags: <defaults>
</compile_context>

<pallas_src>
import functools
import math

import jax
import jax.numpy as jnp
from jax.experimental import pallas as pl
from jax.experimental.pallas import tpu as pltpu

_LANE = 128
_SUBLANE = 8


def _scaling_kernel(x_ref, scale_ref, y_ref, *, reverse):
    """One grid step: y = x * exp(+/- scale), scale row-broadcast over the tile."""
    s = scale_ref[...].astype(jnp.float32)                  # (1, W)
    factor = jnp.exp(-s) if reverse else jnp.exp(s)         # EUP work, ~free filler
    # Multiply in the input dtype (bf16 stays packed; f32 path unchanged).
    y_ref[...] = x_ref[...] * factor.astype(x_ref.dtype)


def scaling_forward(x, scale, *, reverse=False, eps=1e-10,
                    target_block_bytes=2 * 1024 * 1024):
    """Pallas wrapper mirroring Scaling.forward.

    Args:
      x:     (B, dim) input.
      scale: (1, dim) log-scale parameter.
      reverse: inference (True) vs sampling (False) direction.
    Returns:
      (y, log_det_J) with y.shape == x.shape, log_det_J a scalar float32.
    """
    B, dim = x.shape
    assert scale.shape == (1, dim)

    # log-determinant of the Jacobian: tiny scalar reduction -> plain JAX.
    log_det_J = jnp.sum(scale.astype(jnp.float32)) + jnp.float32(eps)

    # ---- lane-dense repack: (B, dim) -> (R, W), W a multiple of 128 -------
    # Pack k consecutive batch rows into one wide row; tile `scale` k times so
    # the broadcast multiply is unchanged. Pure layout plumbing in the wrapper.
    k = _LANE // math.gcd(dim, _LANE)
    W = k * dim
    R = -(-B // k)                       # cdiv
    pad_b = R * k - B
    x2 = jnp.pad(x, ((0, pad_b), (0, 0))) if pad_b else x
    x2 = x2.reshape(R, W)
    scale2 = jnp.tile(scale, (1, k)) if k > 1 else scale     # (1, W)

    # ---- row tile: as large as fits a conservative per-block VMEM budget ---
    itemsize = jnp.dtype(x.dtype).itemsize
    rows = target_block_bytes // (W * itemsize)
    rows = (rows // _SUBLANE) * _SUBLANE
    rows = max(_SUBLANE, rows)
    # Don't use a tile taller than the (sublane-rounded) data itself.
    rows = min(rows, max(_SUBLANE, ((R + _SUBLANE - 1) // _SUBLANE) * _SUBLANE))
    grid_r = pl.cdiv(R, rows)
    pad_r = grid_r * rows - R
    if pad_r:
        x2 = jnp.pad(x2, ((0, pad_r), (0, 0)))   # zero rows: harmless extra work

    kernel = functools.partial(_scaling_kernel, reverse=reverse)

    y2 = pl.pallas_call(
        kernel,
        out_shape=jax.ShapeDtypeStruct(x2.shape, x.dtype),
        grid_spec=pltpu.PrefetchScalarGridSpec(
            num_scalar_prefetch=0,
            grid=(grid_r,),
            in_specs=[
                pl.BlockSpec((rows, W), lambda i: (i, 0)),   # x tile over batch
                pl.BlockSpec((1, W), lambda i: (0, 0)),      # scale, resident
            ],
            out_specs=pl.BlockSpec((rows, W), lambda i: (i, 0)),
        ),
        compiler_params=pltpu.CompilerParams(
            # No cross-step dependence -> megacore-shard the batch loop (v7x).
            dimension_semantics=("parallel",),
        ),
    )(x2, scale2)

    # ---- undo the repack / padding ----
    y = y2[:R].reshape(R * k, dim)[:B]
    return y, log_det_J


if __name__ == "__main__":
    B, dim = 8, 32
    eps = 1e-10

    key = jax.random.PRNGKey(0)
    kx, ks = jax.random.split(key)
    x = jax.random.normal(kx, (B, dim), dtype=jnp.float32)
    # PyTorch inits scale to zeros; use small random values so the exp /
    # broadcast path is actually exercised.
    scale = 0.1 * jax.random.normal(ks, (1, dim), dtype=jnp.float32)

    # Forward (sampling) direction.
    y, logdet = scaling_forward(x, scale, reverse=False, eps=eps)
    # Reverse (inference) direction.
    y_rev, logdet_rev = scaling_forward(x, scale, reverse=True, eps=eps)
    jax.block_until_ready((y, logdet, y_rev, logdet_rev))

    # Reference check against plain JAX semantics of the PyTorch module.
    y_ref = x * jnp.exp(scale)
    y_rev_ref = x * jnp.exp(-scale)
    ld_ref = jnp.sum(scale) + eps
    assert y.shape == x.shape and y_rev.shape == x.shape
    assert jnp.allclose(y, y_ref, atol=1e-6, rtol=1e-6)
    assert jnp.allclose(y_rev, y_rev_ref, atol=1e-6, rtol=1e-6)
    assert jnp.allclose(logdet, ld_ref, atol=1e-6, rtol=1e-6)
    assert jnp.allclose(logdet_rev, ld_ref, atol=1e-6, rtol=1e-6)

    # Second check: non-divisible batch + dim not a multiple of 128, to
    # exercise the lane-dense repack and padding paths.
    B2, dim2 = 50, 48
    kx2, ks2 = jax.random.split(jax.random.PRNGKey(1))
    x2 = jax.random.normal(kx2, (B2, dim2), dtype=jnp.float32)
    s2 = 0.05 * jax.random.normal(ks2, (1, dim2), dtype=jnp.float32)
    y2, ld2 = scaling_forward(x2, s2, reverse=False, eps=eps)
    jax.block_until_ready((y2, ld2))
    assert y2.shape == x2.shape
    assert jnp.allclose(y2, x2 * jnp.exp(s2), atol=1e-6, rtol=1e-6)
    assert jnp.allclose(ld2, jnp.sum(s2) + eps, atol=1e-6, rtol=1e-6)

    print("KERNEL_OK")
</pallas_src>

<mosaic_0001>
module attributes {stable_mosaic.version = 11 : i64} {
  func.func @_scaling_kernel(%arg0: i32, %arg1: memref<8x128xf32, #tpu.memory_space<vmem>>, %arg2: memref<1x128xf32, #tpu.memory_space<vmem>>, %arg3: memref<8x128xf32, #tpu.memory_space<vmem>>) attributes {dimension_semantics = [#tpu.dimension_semantics<parallel>], iteration_bounds = array<i64: 1>, scalar_prefetch = 0 : i64, scratch_operands = 0 : i64, tpu.core_type = #tpu.core_type<tc>, window_params = [{transform_indices = @transform_0, window_bounds = array<i64: 8, 128>}, {pipeline_mode = #tpu.pipeline_mode<synchronous>, transform_indices = @transform_1, window_bounds = array<i64: 1, 128>}, {transform_indices = @transform_2, window_bounds = array<i64: 8, 128>}]} {
    %c0 = arith.constant 0 : index
    %c0_0 = arith.constant 0 : index
    %0 = vector.load %arg2[%c0, %c0_0] : memref<1x128xf32, #tpu.memory_space<vmem>>, vector<1x128xf32>
    %1 = math.exp %0 : vector<1x128xf32>
    %c0_1 = arith.constant 0 : index
    %c0_2 = arith.constant 0 : index
    %2 = vector.load %arg1[%c0_1, %c0_2] : memref<8x128xf32, #tpu.memory_space<vmem>>, vector<8x128xf32>
    %3 = vector.broadcast %1 : vector<1x128xf32> to vector<8x128xf32>
    %4 = arith.mulf %2, %3 : vector<8x128xf32>
    %c0_3 = arith.constant 0 : index
    %c0_4 = arith.constant 0 : index
    %5 = vector.load %arg3[%c0_3, %c0_4] : memref<8x128xf32, #tpu.memory_space<vmem>>, vector<8x128xf32>
    tpu.vector_store %arg3[%c0_3, %c0_4], %4 {strides = array<i32>} : memref<8x128xf32, #tpu.memory_space<vmem>>, vector<8x128xf32>,
    return
  }
  func.func @transform_0(%arg0: i32) -> (i32, i32) {
    %c0_i32 = arith.constant 0 : i32
    %c0_i32_0 = arith.constant 0 : i32
    return %arg0, %c0_i32 : i32, i32
  }
  func.func @transform_1(%arg0: i32) -> (i32, i32) {
    %c0_i32 = arith.constant 0 : i32
    %c0_i32_0 = arith.constant 0 : i32
    %c0_i32_1 = arith.constant 0 : i32
    return %c0_i32, %c0_i32_0 : i32, i32
  }
  func.func @transform_2(%arg0: i32) -> (i32, i32) {
    %c0_i32 = arith.constant 0 : i32
    %c0_i32_0 = arith.constant 0 : i32
    return %arg0, %c0_i32 : i32, i32
  }
}

</mosaic_0001>

<llo_original>
// kernel: tpu_custom_call.1
$region0: #{tpu_custom_call.1}
  #allocation0 [shape = 'u32[]', space=smem, size = 0x4, offset = 0x4, fixed_abs, tag = 'smem constant byte address 0x4 - core index']
  #allocation1 [shape = 'u32[144,128]{1,0:T(1,128)}', space=vmem, size = 0x12000, scoped, tag = 'internal scratch']
  %s0 = inlined_call_operand.hbm [shape: f32[8,128], index: 0, kind: input, shape index: {}]
  %s1 = inlined_call_operand.vmem [shape: f32[1,128], index: 1, kind: input, shape index: {}]
  %s2 = inlined_call_operand.hbm [shape: f32[8,128], index: 2, kind: output, shape index: {}]
  %s3 = sld [smem:[#allocation0]]
  $region22: #{tpu_custom_call.1} parent=0
    _
  %s5 = ssub.s32 1, %s3
  %s6 = scalar_select 0, %s5, %s3
  $region1: #{tpu_custom_call.1} parent=0
    #allocation2 [shape = 'u8[4096]{0}', space=vmem, size = 0x1000, scoped, tag = 'input window, operand 0, single buffered']
    #allocation3 [shape = 's32[1]{0}', space=sflag, size = 0x4, scoped, tag = 'scoped memory for tpu_custom_call.1']
    #allocation4 [shape = 's32[1]{0}', space=sflag, size = 0x4, scoped, tag = 'scoped memory for tpu_custom_call.1']
    #allocation5 [shape = 'u8[4096]{0}', space=vmem, size = 0x1000, scoped, tag = 'output window, operand 0, single buffered']
    %7 = vsyncpa [#allocation3], 0
    %8 = vsyncpa [#allocation4], 0
    // Predicated region
    $region2: #{tpu_custom_call.1} parent=1 // pred_check
      _
    $region3: #{tpu_custom_call.1} parent=1 // pred_check_branch
      %10 = sbr.rel (0) target = $region5
    $region4: #{tpu_custom_call.1} parent=1 // pred_region
      %s12 = ssub.s32 128, 128
      %13 = vsyncadd [#allocation3], %s12
      %s15 = sshll.u32 [#allocation2], 4
      %s16 = int_to_ptr.vmem [resolvable:$true] %s15
      %18 = dma.hbm_to_vmem [thread:$0]  %s0, 128, %s16, [#allocation3]
    $region5: #{tpu_custom_call.1} parent=1 // pred_fallthru
      _
    // Predicated region
    $region6: #{tpu_custom_call.1} parent=1 // pred_check
      _
    $region7: #{tpu_custom_call.1} parent=1 // pred_check_branch
      %20 = sbr.rel (0) target = $region9
    $region8: #{tpu_custom_call.1} parent=1 // pred_region
      _
    $region9: #{tpu_custom_call.1} parent=1 // pred_fallthru
      _
    // Predicated region
    $region10: #{tpu_custom_call.1} parent=1 // pred_check
      _
    $region11: #{tpu_custom_call.1} parent=1 // pred_check_branch
      %22 = sbr.rel (0) target = $region13
    $region12: #{tpu_custom_call.1} parent=1 // pred_region
      %23 = dma.done [#allocation3], 128
    $region13: #{tpu_custom_call.1} parent=1 // pred_fallthru
      _
    %v24 = vld [vmem:[%s1] sm:$0x1]
    %v25 = vmul.f32 %v24, 1.442695
    %v26 = vpow.pop %v25
    %v27 = vld [vmem:[#allocation2] sm:$0xff]
    %v29 = vlaneseq
    %v30 = vshrl.u32 %v29, 7
    %v31 = vsub.s32 0, %v30
    %v32 = vrot.slane %v26, %v31
    %v34 = vmul.f32 %v27, %v32
    %35 = vst [vmem:[#allocation5] sm:$0xff] %v34
    // Predicated region
    $region14: #{tpu_custom_call.1} parent=1 // pred_check
      _
    $region15: #{tpu_custom_call.1} parent=1 // pred_check_branch
      %37 = sbr.rel (0) target = $region17
    $region16: #{tpu_custom_call.1} parent=1 // pred_region
      %s39 = ssub.s32 128, 128
      %40 = vsyncadd [#allocation4], %s39
      %s42 = sshll.u32 [#allocation5], 4
      %s43 = int_to_ptr.vmem [resolvable:$true] %s42
      %45 = dma.vmem_to_hbm [thread:$0]  %s43, 128, %s2, [#allocation4]
    $region17: #{tpu_custom_call.1} parent=1 // pred_fallthru
      _
    // Predicated region
    $region18: #{tpu_custom_call.1} parent=1 // pred_check
      _
    $region19: #{tpu_custom_call.1} parent=1 // pred_check_branch
      %47 = sbr.rel (0) target = $region21
    $region20: #{tpu_custom_call.1} parent=1 // pred_region
      %48 = dma.done [#allocation4], 128
    $region21: #{tpu_custom_call.1} parent=1 // pred_fallthru
      _
    %49 = vsyncpa [#allocation3], 1
    %50 = vsyncpa [#allocation4], 1

</llo_original>
